<compile_context>
chip_gen: v7x
topology: tpu7x:2x2x1
jax: 0.10.0
libtpu: 0.0.40
codegen_flags: <defaults>
</compile_context>

<pallas_src>
import functools
import math

import jax
import jax.numpy as jnp
from jax.experimental import pallas as pl
from jax.experimental.pallas import tpu as pltpu

EPS = 1e-5                 # matches forward(..., epsilon=1e-05)
LOG2PI = math.log(2.0 * math.pi)


def _softplus(v):
    # numerically stable softplus; exp/log1p run on the EUP
    return jnp.maximum(v, 0.0) + jnp.log1p(jnp.exp(-jnp.abs(v)))


def vae_fwd_kernel(x_ref, noise_ref,
                   w_enc_t_ref, b_enc_ref, w_dec_ref, b_dec_ref,
                   out_ref, *, beta):
    x = x_ref[...]                      # (T, D) f32
    noise = noise_ref[...]              # (T, L) f32
    T, D = x.shape
    L = noise.shape[1]

    # ---- encoder (fused mu|var heads) off the MXU ----
    # (T,D)@(D,2L) at D=16, 2L=4 is <0.5% MXU utilization; do it as 2L
    # VPU multiplies + XLU lane reductions instead (static unroll, 2L is tiny).
    w_enc_t = w_enc_t_ref[...]          # (2L, D), VMEM-resident
    enc_cols = [
        jnp.sum(x * w_enc_t[j:j + 1, :], axis=-1, keepdims=True)
        for j in range(2 * L)
    ]
    enc = jnp.concatenate(enc_cols, axis=-1) + b_enc_ref[...]   # (T, 2L)
    z_mu = enc[:, :L]
    z_var = _softplus(enc[:, L:])

    # ---- q_dist = Independent(Normal(z_mu, sqrt(z_var)+eps), 1); z = rsample ----
    q_sigma = jnp.sqrt(z_var) + EPS
    z = z_mu + q_sigma * noise

    # ---- decoder (fused mu|var heads): K = L is tiny -> VPU outer-product FMA ----
    w_dec = w_dec_ref[...]              # (L, 2D), VMEM-resident, tiny
    dec = b_dec_ref[...] + z[:, 0:1] * w_dec[0:1, :]
    for l in range(1, L):               # static trip count (L is compile-time)
        dec = dec + z[:, l:l + 1] * w_dec[l:l + 1, :]
    x_mu = dec[:, :D]
    x_var = _softplus(dec[:, D:])
    p_sigma = jnp.sqrt(x_var) + EPS

    # ---- log p(x|z), KL(q||prior) (single-sample MC estimate), ELBO ----
    inv_p = pl.reciprocal(p_sigma, approx=True)          # EUP vrcp
    t = (x - x_mu) * inv_p
    log_px = (jnp.sum(-0.5 * t * t - jnp.log(p_sigma), axis=-1, keepdims=True)
              - 0.5 * D * LOG2PI)
    # kl = log q(z|x) - log p(z); (z - z_mu)/q_sigma == noise, 0.5*log(2*pi) cancels
    kl = jnp.sum(0.5 * (z * z - noise * noise) - jnp.log(q_sigma),
                 axis=-1, keepdims=True)
    elbo = log_px - beta * kl

    # ---- single dense store of the per-sample result block (no zero-fill,
    #      no per-column masked stores) ----
    out_ref[...] = jnp.concatenate(
        [elbo, log_px, kl, z, z_mu, z_var, x_mu, x_var], axis=-1)


def _pick_tile(n, row_bytes):
    """Largest power-of-two tile that (a) fits the double-buffered VMEM budget
    and (b) leaves the grid with >= 4 steps when the batch allows it."""
    cap = max(8, (24 * 1024 * 1024) // (2 * row_bytes))   # x2: double buffering
    want = max(8, pl.cdiv(n, 4))                          # keep >= ~4 grid steps
    for t in (8192, 4096, 2048, 1024, 512, 256, 128, 64, 32, 16, 8):
        if t <= cap and t <= want:
            return t
    return 8


def vae_forward(x, noise, params, beta=1.0, tile_n=None):
    """Pallas-fused VAE forward.  Returns the same 8-tuple as basemodel.forward."""
    N, D = x.shape
    L = noise.shape[1]
    n_cols = 3 + 3 * L + 2 * D          # elbo|log_px|kl|z|z_mu|z_var|x_mu|x_var

    row_bytes = 4 * (D + L + n_cols)
    if tile_n is None:
        tile_n = _pick_tile(N, row_bytes)
    assert tile_n % 8 == 0, "tile_n must be a multiple of 8 (sublane tiling)"

    # No tile_n = N fallback: pad the batch up to a multiple of the tile so the
    # grid always has multiple steps and VMEM use stays bounded.
    n_pad = pl.cdiv(N, tile_n) * tile_n
    if n_pad != N:
        pad = n_pad - N
        x_p = jnp.pad(x, ((0, pad), (0, 0)))
        noise_p = jnp.pad(noise, ((0, pad), (0, 0)))
    else:
        x_p, noise_p = x, noise
    grid = (n_pad // tile_n,)

    w_enc_t = params["w_enc"].T          # (2L, D): lane-major rows for the kernel
    b_enc = params["b_enc"]
    w_dec, b_dec = params["w_dec"], params["b_dec"]

    in_specs = [
        pl.BlockSpec((tile_n, D), lambda i: (i, 0)),        # x      : tiled over batch
        pl.BlockSpec((tile_n, L), lambda i: (i, 0)),        # noise  : tiled over batch
        pl.BlockSpec(w_enc_t.shape, lambda i: (0, 0)),      # weights: resident in VMEM
        pl.BlockSpec(b_enc.shape, lambda i: (0, 0)),
        pl.BlockSpec(w_dec.shape, lambda i: (0, 0)),
        pl.BlockSpec(b_dec.shape, lambda i: (0, 0)),
    ]
    # last block dim == full array dim (n_cols), so the sub-128 width is legal
    # and the HBM writeback carries only useful bytes (no 128-lane zero pad).
    out_specs = pl.BlockSpec((tile_n, n_cols), lambda i: (i, 0))

    flops = 2 * n_pad * D * (2 * L) + 2 * n_pad * L * (2 * D) + 12 * n_pad * (D + L)
    transcendentals = 5 * n_pad * (D + L)       # exp/log1p/log/sqrt/rcp
    bytes_accessed = 4 * (n_pad * (D + L + n_cols) + w_enc_t.size + b_enc.size
                          + w_dec.size + b_dec.size)

    slab = pl.pallas_call(
        functools.partial(vae_fwd_kernel, beta=float(beta)),
        grid=grid,
        in_specs=in_specs,
        out_specs=out_specs,
        out_shape=jax.ShapeDtypeStruct((n_pad, n_cols), jnp.float32),
        compiler_params=pltpu.CompilerParams(dimension_semantics=("parallel",)),
        cost_estimate=pl.CostEstimate(flops=flops,
                                      transcendentals=transcendentals,
                                      bytes_accessed=bytes_accessed),
    )(x_p, noise_p, w_enc_t, b_enc, w_dec, b_dec)

    slab = slab[:N]                      # drop padded rows before any reduction
    elbo = slab[:, 0]
    log_px = slab[:, 1]
    kl = slab[:, 2]
    z = slab[:, 3:3 + L]
    z_mu = slab[:, 3 + L:3 + 2 * L]
    z_var = slab[:, 3 + 2 * L:3 + 3 * L]
    c0 = 3 + 3 * L
    x_mu = slab[:, c0:c0 + D]
    x_var = slab[:, c0 + D:c0 + 2 * D]

    return (jnp.mean(elbo), jnp.mean(log_px), jnp.mean(kl),
            x_mu, x_var, z, z_mu, z_var)


def init_params(key, data_dim, latent_size):
    """Fused-head parameters: W_enc = [w_enc_mu | w_enc_var], W_dec = [w_dec_mu | w_dec_var]."""
    ks = jax.random.split(key, 2)
    s_in = 1.0 / math.sqrt(data_dim)
    s_lat = 1.0 / math.sqrt(latent_size)
    return {
        "w_enc": jax.random.normal(ks[0], (data_dim, 2 * latent_size), jnp.float32) * s_in,
        "b_enc": jnp.zeros((1, 2 * latent_size), jnp.float32),
        "w_dec": jax.random.normal(ks[1], (latent_size, 2 * data_dim), jnp.float32) * s_lat,
        "b_dec": jnp.zeros((1, 2 * data_dim), jnp.float32),
    }


def ref_forward(x, noise, params, beta=1.0, eps=EPS):
    """Pure-JAX reference mirroring basemodel.forward (for correctness checking)."""
    L = params["w_enc"].shape[1] // 2
    D = params["w_dec"].shape[1] // 2
    enc = x @ params["w_enc"] + params["b_enc"]
    z_mu, z_var = enc[:, :L], jax.nn.softplus(enc[:, L:])
    q_sigma = jnp.sqrt(z_var) + eps
    z = z_mu + q_sigma * noise
    dec = z @ params["w_dec"] + params["b_dec"]
    x_mu, x_var = dec[:, :D], jax.nn.softplus(dec[:, D:])
    p_sigma = jnp.sqrt(x_var) + eps
    log_px = jnp.sum(-0.5 * ((x - x_mu) / p_sigma) ** 2 - jnp.log(p_sigma)
                     - 0.5 * LOG2PI, axis=-1)
    log_qz = jnp.sum(-0.5 * ((z - z_mu) / q_sigma) ** 2 - jnp.log(q_sigma)
                     - 0.5 * LOG2PI, axis=-1)
    log_pz = jnp.sum(-0.5 * z * z - 0.5 * LOG2PI, axis=-1)
    kl = log_qz - log_pz
    elbo = log_px - beta * kl
    return (elbo.mean(), log_px.mean(), kl.mean(), x_mu, x_var, z, z_mu, z_var)


def _check(outs, refs, N, D, LATENT):
    elbo_m, logpx_m, kl_m, x_mu, x_var, z, z_mu, z_var = outs
    assert x_mu.shape == (N, D) and x_var.shape == (N, D)
    assert z.shape == (N, LATENT) and z_mu.shape == (N, LATENT) and z_var.shape == (N, LATENT)
    assert jnp.isfinite(elbo_m) and jnp.isfinite(logpx_m) and jnp.isfinite(kl_m)
    names = ("elbo", "log_px", "kl", "x_mu", "x_var", "z", "z_mu", "z_var")
    for name, got, want in zip(names, outs, refs):
        assert jnp.allclose(got, want, rtol=1e-2, atol=1e-2), f"mismatch in {name}"


if __name__ == "__main__":
    D, LATENT = 16, 2          # latent_size=2 matches basemodel default
    key = jax.random.PRNGKey(0)
    k_x, k_noise, k_p, k_x2, k_n2 = jax.random.split(key, 5)
    params = init_params(k_p, D, LATENT)

    # Test 1: divisible batch, explicit tile -> grid=(4,) exercises the
    # batch-tiled, parallel, double-buffered pipeline.
    N1 = 64
    x1 = jax.random.normal(k_x, (N1, D), jnp.float32)
    noise1 = jax.random.normal(k_noise, (N1, LATENT), jnp.float32)
    outs1 = jax.block_until_ready(vae_forward(x1, noise1, params, tile_n=16))
    _check(outs1, ref_forward(x1, noise1, params), N1, D, LATENT)

    # Test 2: non-divisible batch, auto tile -> exercises the padded-tail path
    # (no tile_n = N fallback).
    N2 = 50
    x2 = jax.random.normal(k_x2, (N2, D), jnp.float32)
    noise2 = jax.random.normal(k_n2, (N2, LATENT), jnp.float32)
    outs2 = jax.block_until_ready(vae_forward(x2, noise2, params))
    _check(outs2, ref_forward(x2, noise2, params), N2, D, LATENT)

    print("KERNEL_OK")
</pallas_src>

<mosaic_0001>
module attributes {stable_mosaic.version = 11 : i64} {
  func.func @vae_fwd_kernel(%arg0: i32, %arg1: memref<16x16xf32, #tpu.memory_space<vmem>>, %arg2: memref<16x2xf32, #tpu.memory_space<vmem>>, %arg3: memref<4x16xf32, #tpu.memory_space<vmem>>, %arg4: memref<1x4xf32, #tpu.memory_space<vmem>>, %arg5: memref<2x32xf32, #tpu.memory_space<vmem>>, %arg6: memref<1x32xf32, #tpu.memory_space<vmem>>, %arg7: memref<16x41xf32, #tpu.memory_space<vmem>>) attributes {dimension_semantics = [#tpu.dimension_semantics<parallel>], iteration_bounds = array<i64: 4>, scalar_prefetch = 0 : i64, scratch_operands = 0 : i64, tpu.core_type = #tpu.core_type<tc>, window_params = [{transform_indices = @transform_0, window_bounds = array<i64: 16, 16>}, {transform_indices = @transform_1, window_bounds = array<i64: 16, 2>}, {pipeline_mode = #tpu.pipeline_mode<synchronous>, transform_indices = @transform_2, window_bounds = array<i64: 4, 16>}, {pipeline_mode = #tpu.pipeline_mode<synchronous>, transform_indices = @transform_3, window_bounds = array<i64: 1, 4>}, {pipeline_mode = #tpu.pipeline_mode<synchronous>, transform_indices = @transform_4, window_bounds = array<i64: 2, 32>}, {pipeline_mode = #tpu.pipeline_mode<synchronous>, transform_indices = @transform_5, window_bounds = array<i64: 1, 32>}, {transform_indices = @transform_6, window_bounds = array<i64: 16, 41>}]} {
    %c0 = arith.constant 0 : index
    %c0_0 = arith.constant 0 : index
    %0 = vector.load %arg1[%c0, %c0_0] : memref<16x16xf32, #tpu.memory_space<vmem>>, vector<16x16xf32>
    %c0_1 = arith.constant 0 : index
    %c0_2 = arith.constant 0 : index
    %1 = vector.load %arg2[%c0_1, %c0_2] : memref<16x2xf32, #tpu.memory_space<vmem>>, vector<16x2xf32>
    %c0_3 = arith.constant 0 : index
    %c0_4 = arith.constant 0 : index
    %2 = vector.load %arg3[%c0_3, %c0_4] : memref<4x16xf32, #tpu.memory_space<vmem>>, vector<4x16xf32>
    %3 = vector.extract_strided_slice %2 {offsets = [0, 0], sizes = [1, 16], strides = [1, 1]} : vector<4x16xf32> to vector<1x16xf32>
    %4 = vector.broadcast %3 : vector<1x16xf32> to vector<16x16xf32>
    %5 = arith.mulf %0, %4 : vector<16x16xf32>
    %cst = arith.constant dense<0.000000e+00> : vector<16xf32>
    %6 = vector.multi_reduction <add>, %5, %cst [1] : vector<16x16xf32> to vector<16xf32>
    %7 = vector.shape_cast %6 : vector<16xf32> to vector<16x1xf32>
    %8 = vector.extract_strided_slice %2 {offsets = [1, 0], sizes = [1, 16], strides = [1, 1]} : vector<4x16xf32> to vector<1x16xf32>
    %9 = vector.broadcast %8 : vector<1x16xf32> to vector<16x16xf32>
    %10 = arith.mulf %0, %9 : vector<16x16xf32>
    %cst_5 = arith.constant dense<0.000000e+00> : vector<16xf32>
    %11 = vector.multi_reduction <add>, %10, %cst_5 [1] : vector<16x16xf32> to vector<16xf32>
    %12 = vector.shape_cast %11 : vector<16xf32> to vector<16x1xf32>
    %13 = vector.extract_strided_slice %2 {offsets = [2, 0], sizes = [1, 16], strides = [1, 1]} : vector<4x16xf32> to vector<1x16xf32>
    %14 = vector.broadcast %13 : vector<1x16xf32> to vector<16x16xf32>
    %15 = arith.mulf %0, %14 : vector<16x16xf32>
    %cst_6 = arith.constant dense<0.000000e+00> : vector<16xf32>
    %16 = vector.multi_reduction <add>, %15, %cst_6 [1] : vector<16x16xf32> to vector<16xf32>
    %17 = vector.shape_cast %16 : vector<16xf32> to vector<16x1xf32>
    %18 = vector.extract_strided_slice %2 {offsets = [3, 0], sizes = [1, 16], strides = [1, 1]} : vector<4x16xf32> to vector<1x16xf32>
    %19 = vector.broadcast %18 : vector<1x16xf32> to vector<16x16xf32>
    %20 = arith.mulf %0, %19 : vector<16x16xf32>
    %cst_7 = arith.constant dense<0.000000e+00> : vector<16xf32>
    %21 = vector.multi_reduction <add>, %20, %cst_7 [1] : vector<16x16xf32> to vector<16xf32>
    %22 = vector.shape_cast %21 : vector<16xf32> to vector<16x1xf32>
    %23 = tpu.concatenate %7, %12, %17, %22 in 1 : vector<16x1xf32>, vector<16x1xf32>, vector<16x1xf32>, vector<16x1xf32> -> vector<16x4xf32>
    %c0_8 = arith.constant 0 : index
    %c0_9 = arith.constant 0 : index
    %24 = vector.load %arg4[%c0_8, %c0_9] : memref<1x4xf32, #tpu.memory_space<vmem>>, vector<1x4xf32>
    %25 = vector.broadcast %24 : vector<1x4xf32> to vector<16x4xf32>
    %26 = arith.addf %23, %25 : vector<16x4xf32>
    %27 = vector.extract_strided_slice %26 {offsets = [0, 0], sizes = [16, 2], strides = [1, 1]} : vector<16x4xf32> to vector<16x2xf32>
    %28 = vector.extract_strided_slice %26 {offsets = [0, 2], sizes = [16, 2], strides = [1, 1]} : vector<16x4xf32> to vector<16x2xf32>
    %cst_10 = arith.constant 0.000000e+00 : f32
    %29 = vector.broadcast %cst_10 : f32 to vector<16x2xf32>
    %30 = arith.maximumf %28, %29 : vector<16x2xf32>
    %31 = math.absf %28 : vector<16x2xf32>
    %cst_11 = arith.constant 0.000000e+00 : f32
    %32 = vector.broadcast %cst_11 : f32 to vector<16x2xf32>
    %33 = arith.subf %32, %31 : vector<16x2xf32>
    %34 = math.exp %33 : vector<16x2xf32>
    %35 = math.log1p %34 : vector<16x2xf32>
    %36 = arith.addf %30, %35 : vector<16x2xf32>
    %37 = math.sqrt %36 : vector<16x2xf32>
    %cst_12 = arith.constant 9.99999974E-6 : f32
    %38 = vector.broadcast %cst_12 : f32 to vector<16x2xf32>
    %39 = arith.addf %37, %38 : vector<16x2xf32>
    %40 = arith.mulf %39, %1 : vector<16x2xf32>
    %41 = arith.addf %27, %40 : vector<16x2xf32>
    %c0_13 = arith.constant 0 : index
    %c0_14 = arith.constant 0 : index
    %42 = vector.load %arg5[%c0_13, %c0_14] : memref<2x32xf32, #tpu.memory_space<vmem>>, vector<2x32xf32>
    %c0_15 = arith.constant 0 : index
    %c0_16 = arith.constant 0 : index
    %43 = vector.load %arg6[%c0_15, %c0_16] : memref<1x32xf32, #tpu.memory_space<vmem>>, vector<1x32xf32>
    %44 = vector.extract_strided_slice %41 {offsets = [0, 0], sizes = [16, 1], strides = [1, 1]} : vector<16x2xf32> to vector<16x1xf32>
    %45 = vector.extract_strided_slice %42 {offsets = [0, 0], sizes = [1, 32], strides = [1, 1]} : vector<2x32xf32> to vector<1x32xf32>
    %46 = vector.broadcast %44 : vector<16x1xf32> to vector<16x32xf32>
    %47 = vector.broadcast %45 : vector<1x32xf32> to vector<16x32xf32>
    %48 = arith.mulf %46, %47 : vector<16x32xf32>
    %49 = vector.broadcast %43 : vector<1x32xf32> to vector<16x32xf32>
    %50 = arith.addf %49, %48 : vector<16x32xf32>
    %51 = vector.extract_strided_slice %41 {offsets = [0, 1], sizes = [16, 1], strides = [1, 1]} : vector<16x2xf32> to vector<16x1xf32>
    %52 = vector.extract_strided_slice %42 {offsets = [1, 0], sizes = [1, 32], strides = [1, 1]} : vector<2x32xf32> to vector<1x32xf32>
    %53 = vector.broadcast %51 : vector<16x1xf32> to vector<16x32xf32>
    %54 = vector.broadcast %52 : vector<1x32xf32> to vector<16x32xf32>
    %55 = arith.mulf %53, %54 : vector<16x32xf32>
    %56 = arith.addf %50, %55 : vector<16x32xf32>
    %57 = vector.extract_strided_slice %56 {offsets = [0, 0], sizes = [16, 16], strides = [1, 1]} : vector<16x32xf32> to vector<16x16xf32>
    %58 = vector.extract_strided_slice %56 {offsets = [0, 16], sizes = [16, 16], strides = [1, 1]} : vector<16x32xf32> to vector<16x16xf32>
    %cst_17 = arith.constant 0.000000e+00 : f32
    %59 = vector.broadcast %cst_17 : f32 to vector<16x16xf32>
    %60 = arith.maximumf %58, %59 : vector<16x16xf32>
    %61 = math.absf %58 : vector<16x16xf32>
    %cst_18 = arith.constant 0.000000e+00 : f32
    %62 = vector.broadcast %cst_18 : f32 to vector<16x16xf32>
    %63 = arith.subf %62, %61 : vector<16x16xf32>
    %64 = math.exp %63 : vector<16x16xf32>
    %65 = math.log1p %64 : vector<16x16xf32>
    %66 = arith.addf %60, %65 : vector<16x16xf32>
    %67 = math.sqrt %66 : vector<16x16xf32>
    %cst_19 = arith.constant 9.99999974E-6 : f32
    %68 = vector.broadcast %cst_19 : f32 to vector<16x16xf32>
    %69 = arith.addf %67, %68 : vector<16x16xf32>
    %70 = tpu.reciprocal %69 {approx = true} : vector<16x16xf32> -> vector<16x16xf32>
    %71 = arith.subf %0, %57 : vector<16x16xf32>
    %72 = arith.mulf %71, %70 : vector<16x16xf32>
    %cst_20 = arith.constant -5.000000e-01 : f32
    %73 = vector.broadcast %cst_20 : f32 to vector<16x16xf32>
    %74 = arith.mulf %73, %72 : vector<16x16xf32>
    %75 = arith.mulf %74, %72 : vector<16x16xf32>
    %76 = math.log %69 : vector<16x16xf32>
    %77 = arith.subf %75, %76 : vector<16x16xf32>
    %cst_21 = arith.constant dense<0.000000e+00> : vector<16xf32>
    %78 = vector.multi_reduction <add>, %77, %cst_21 [1] : vector<16x16xf32> to vector<16xf32>
    %79 = vector.shape_cast %78 : vector<16xf32> to vector<16x1xf32>
    %cst_22 = arith.constant 14.7030163 : f32
    %80 = vector.broadcast %cst_22 : f32 to vector<16x1xf32>
    %81 = arith.subf %79, %80 : vector<16x1xf32>
    %82 = arith.mulf %41, %41 : vector<16x2xf32>
    %83 = arith.mulf %1, %1 : vector<16x2xf32>
    %84 = arith.subf %82, %83 : vector<16x2xf32>
    %cst_23 = arith.constant 5.000000e-01 : f32
    %85 = vector.broadcast %cst_23 : f32 to vector<16x2xf32>
    %86 = arith.mulf %85, %84 : vector<16x2xf32>
    %87 = math.log %39 : vector<16x2xf32>
    %88 = arith.subf %86, %87 : vector<16x2xf32>
    %cst_24 = arith.constant dense<0.000000e+00> : vector<16xf32>
    %89 = vector.multi_reduction <add>, %88, %cst_24 [1] : vector<16x2xf32> to vector<16xf32>
    %90 = vector.shape_cast %89 : vector<16xf32> to vector<16x1xf32>
    %cst_25 = arith.constant 1.000000e+00 : f32
    %91 = vector.broadcast %cst_25 : f32 to vector<16x1xf32>
    %92 = arith.mulf %91, %90 : vector<16x1xf32>
    %93 = arith.subf %81, %92 : vector<16x1xf32>
    %94 = tpu.concatenate %93, %81, %90, %41, %27, %36, %57, %66 in 1 : vector<16x1xf32>, vector<16x1xf32>, vector<16x1xf32>, vector<16x2xf32>, vector<16x2xf32>, vector<16x2xf32>, vector<16x16xf32>, vector<16x16xf32> -> vector<16x41xf32>
    %c0_26 = arith.constant 0 : index
    %c0_27 = arith.constant 0 : index
    %95 = vector.load %arg7[%c0_26, %c0_27] : memref<16x41xf32, #tpu.memory_space<vmem>>, vector<16x41xf32>
    tpu.vector_store %arg7[%c0_26, %c0_27], %94 {strides = array<i32>} : memref<16x41xf32, #tpu.memory_space<vmem>>, vector<16x41xf32>,
    return
  }
  func.func @transform_0(%arg0: i32) -> (i32, i32) {
    %c0_i32 = arith.constant 0 : i32
    %c0_i32_0 = arith.constant 0 : i32
    return %arg0, %c0_i32 : i32, i32
  }
  func.func @transform_1(%arg0: i32) -> (i32, i32) {
    %c0_i32 = arith.constant 0 : i32
    %c0_i32_0 = arith.constant 0 : i32
    return %arg0, %c0_i32 : i32, i32
  }
  func.func @transform_2(%arg0: i32) -> (i32, i32) {
    %c0_i32 = arith.constant 0 : i32
    %c0_i32_0 = arith.constant 0 : i32
    %c0_i32_1 = arith.constant 0 : i32
    return %c0_i32, %c0_i32_0 : i32, i32
  }
  func.func @transform_3(%arg0: i32) -> (i32, i32) {
    %c0_i32 = arith.constant 0 : i32
    %c0_i32_0 = arith.constant 0 : i32
    %c0_i32_1 = arith.constant 0 : i32
    return %c0_i32, %c0_i32_0 : i32, i32
  }
  func.func @transform_4(%arg0: i32) -> (i32, i32) {
    %c0_i32 = arith.constant 0 : i32
    %c0_i32_0 = arith.constant 0 : i32
    %c0_i32_1 = arith.constant 0 : i32
    return %c0_i32, %c0_i32_0 : i32, i32
  }
  func.func @transform_5(%arg0: i32) -> (i32, i32) {
    %c0_i32 = arith.constant 0 : i32
    %c0_i32_0 = arith.constant 0 : i32
    %c0_i32_1 = arith.constant 0 : i32
    return %c0_i32, %c0_i32_0 : i32, i32
  }
  func.func @transform_6(%arg0: i32) -> (i32, i32) {
    %c0_i32 = arith.constant 0 : i32
    %c0_i32_0 = arith.constant 0 : i32
    return %arg0, %c0_i32 : i32, i32
  }
}

</mosaic_0001>

<llo_original>
// kernel: tpu_custom_call.1
$region0: #{tpu_custom_call.1}
  #allocation0 [shape = 'u32[]', space=smem, size = 0x4, offset = 0x4, fixed_abs, tag = 'smem constant byte address 0x4 - core index']
  #allocation1 [shape = 'u32[144,128]{1,0:T(1,128)}', space=vmem, size = 0x12000, scoped, tag = 'internal scratch']
  %s0 = inlined_call_operand.vmem [shape: f32[64,16], index: 0, kind: input, shape index: {}]
  %s1 = inlined_call_operand.vmem [shape: f32[64,2], index: 1, kind: input, shape index: {}]
  %s2 = inlined_call_operand.vmem [shape: f32[4,16], index: 2, kind: input, shape index: {}]
  %s3 = inlined_call_operand.vmem [shape: f32[1,4], index: 3, kind: input, shape index: {}]
  %s4 = inlined_call_operand.vmem [shape: f32[2,32], index: 4, kind: input, shape index: {}]
  %s5 = inlined_call_operand.vmem [shape: f32[1,32], index: 5, kind: input, shape index: {}]
  %s6 = inlined_call_operand.vmem [shape: f32[64,41], index: 6, kind: output, shape index: {}]
  %s7 = sld [smem:[#allocation0]]
  $region57: #{tpu_custom_call.1} parent=0
    _
  %s9 = ssub.s32 1, %s7
  %s10 = scalar_select 0, %s9, %s7
  loop: start=0, step=1, limit=6
  $region2: #{tpu_custom_call.1} parent=0 // loop_pre_header
    _
  $region3: #{tpu_custom_call.1} parent=0 // loop_header
    %s12 = sphi 0, %s16
    %p13 = scmp.ge.s32.totalorder %s12, 6
    %s22 = sphi 0, %s24
    %s25 = sphi 0, %s22
    %s26 = sphi 0, %s25
    %s42 = sphi 0, %s26
    %s48 = sphi 0, %s50
    %s51 = sphi 0, %s48
    %s52 = sphi 0, %s51
    %s68 = sphi 0, %s52
    %s72 = sphi 0, %s72
    %s74 = sphi 0, %s72
    %s75 = sphi 0, %s74
    %s89 = sphi 0, %s75
    %s93 = sphi 0, %s93
    %s95 = sphi 0, %s93
    %s96 = sphi 0, %s95
    %s110 = sphi 0, %s96
    %s114 = sphi 0, %s114
    %s116 = sphi 0, %s114
    %s117 = sphi 0, %s116
    %s131 = sphi 0, %s117
    %s135 = sphi 0, %s135
    %s137 = sphi 0, %s135
    %s138 = sphi 0, %s137
    %s152 = sphi 0, %s138
    %s158 = sphi 0, %s160
    %s161 = sphi 0, %s158
    %s162 = sphi 0, %s161
    %s178 = sphi 0, %s162
  $region4: #{tpu_custom_call.1} parent=0 // loop_header_branch
    %15 = sbr.rel (%p13) target = $region8
  $region5: #{tpu_custom_call.1} parent=0 // loop_body
    %s17 = ssub.s32 %s12, 1
    %s18 = ssub.s32 %s12, 2
    %s19 = sadd.s32 %s12, 1
    %s20 = ssub.s32 %s12, %s19
    %p21 = scmp.eq.s32.totalorder %s20, 0
    %s23 = sadd.s32 %s22, 1
    %s24 = scalar_select %p21, %s22, %s23
    %p27 = pneg %p21
    %p28 = scmp.eq.s32.totalorder %s12, 3
    %p29 = por %p27, %p28
    %p30 = scmp.ne.s32.totalorder %s22, %s25
    %p31 = scmp.eq.s32.totalorder %s12, 0
    %p32 = por %p30, %p31
    %p33 = scmp.ne.s32.totalorder %s22, %s25
    %p34 = scmp.eq.s32.totalorder %s17, 3
    %p35 = por %p33, %p34
    %p36 = scmp.ne.s32.totalorder %s25, %s26
    %p37 = scmp.eq.s32.totalorder %s17, 0
    %p38 = por %p36, %p37
    %p39 = scmp.ne.s32.totalorder %s25, %s26
    %p40 = scmp.eq.s32.totalorder %s18, 3
    %p41 = por %p39, %p40
    %p43 = scmp.ne.s32.totalorder %s26, %s42
    %p44 = scmp.eq.s32.totalorder %s18, 0
    %p45 = por %p43, %p44
    %s46 = ssub.s32 %s12, %s19
    %p47 = scmp.eq.s32.totalorder %s46, 0
    %s49 = sadd.s32 %s48, 1
    %s50 = scalar_select %p47, %s48, %s49
    %p53 = pneg %p47
    %p54 = scmp.eq.s32.totalorder %s12, 3
    %p55 = por %p53, %p54
    %p56 = scmp.ne.s32.totalorder %s48, %s51
    %p57 = scmp.eq.s32.totalorder %s12, 0
    %p58 = por %p56, %p57
    %p59 = scmp.ne.s32.totalorder %s48, %s51
    %p60 = scmp.eq.s32.totalorder %s17, 3
    %p61 = por %p59, %p60
    %p62 = scmp.ne.s32.totalorder %s51, %s52
    %p63 = scmp.eq.s32.totalorder %s17, 0
    %p64 = por %p62, %p63
    %p65 = scmp.ne.s32.totalorder %s51, %s52
    %p66 = scmp.eq.s32.totalorder %s18, 3
    %p67 = por %p65, %p66
    %p69 = scmp.ne.s32.totalorder %s52, %s68
    %p70 = scmp.eq.s32.totalorder %s18, 0
    %p71 = por %p69, %p70
    %s73 = sadd.s32 %s72, 1
    %p76 = scmp.eq.s32.totalorder %s12, 3
    %p77 = scmp.ne.s32.totalorder %s72, %s74
    %p78 = scmp.eq.s32.totalorder %s12, 0
    %p79 = por %p77, %p78
    %p80 = scmp.ne.s32.totalorder %s72, %s74
    %p81 = scmp.eq.s32.totalorder %s17, 3
    %p82 = por %p80, %p81
    %p83 = scmp.ne.s32.totalorder %s74, %s75
    %p84 = scmp.eq.s32.totalorder %s17, 0
    %p85 = por %p83, %p84
    %p86 = scmp.ne.s32.totalorder %s74, %s75
    %p87 = scmp.eq.s32.totalorder %s18, 3
    %p88 = por %p86, %p87
    %p90 = scmp.ne.s32.totalorder %s75, %s89
    %p91 = scmp.eq.s32.totalorder %s18, 0
    %p92 = por %p90, %p91
    %s94 = sadd.s32 %s93, 1
    %p97 = scmp.eq.s32.totalorder %s12, 3
    %p98 = scmp.ne.s32.totalorder %s93, %s95
    %p99 = scmp.eq.s32.totalorder %s12, 0
    %p100 = por %p98, %p99
    %p101 = scmp.ne.s32.totalorder %s93, %s95
    %p102 = scmp.eq.s32.totalorder %s17, 3
    %p103 = por %p101, %p102
    %p104 = scmp.ne.s32.totalorder %s95, %s96
    %p105 = scmp.eq.s32.totalorder %s17, 0
    %p106 = por %p104, %p105
    %p107 = scmp.ne.s32.totalorder %s95, %s96
    %p108 = scmp.eq.s32.totalorder %s18, 3
    %p109 = por %p107, %p108
    %p111 = scmp.ne.s32.totalorder %s96, %s110
    %p112 = scmp.eq.s32.totalorder %s18, 0
    %p113 = por %p111, %p112
    %s115 = sadd.s32 %s114, 1
    %p118 = scmp.eq.s32.totalorder %s12, 3
    %p119 = scmp.ne.s32.totalorder %s114, %s116
    %p120 = scmp.eq.s32.totalorder %s12, 0
    %p121 = por %p119, %p120
    %p122 = scmp.ne.s32.totalorder %s114, %s116
    %p123 = scmp.eq.s32.totalorder %s17, 3
    %p124 = por %p122, %p123
    %p125 = scmp.ne.s32.totalorder %s116, %s117
    %p126 = scmp.eq.s32.totalorder %s17, 0
    %p127 = por %p125, %p126
    %p128 = scmp.ne.s32.totalorder %s116, %s117
    %p129 = scmp.eq.s32.totalorder %s18, 3
    %p130 = por %p128, %p129
    %p132 = scmp.ne.s32.totalorder %s117, %s131
    %p133 = scmp.eq.s32.totalorder %s18, 0
    %p134 = por %p132, %p133
    %s136 = sadd.s32 %s135, 1
    %p139 = scmp.eq.s32.totalorder %s12, 3
    %p140 = scmp.ne.s32.totalorder %s135, %s137
    %p141 = scmp.eq.s32.totalorder %s12, 0
    %p142 = por %p140, %p141
    %p143 = scmp.ne.s32.totalorder %s135, %s137
    %p144 = scmp.eq.s32.totalorder %s17, 3
    %p145 = por %p143, %p144
    %p146 = scmp.ne.s32.totalorder %s137, %s138
    %p147 = scmp.eq.s32.totalorder %s17, 0
    %p148 = por %p146, %p147
    %p149 = scmp.ne.s32.totalorder %s137, %s138
    %p150 = scmp.eq.s32.totalorder %s18, 3
    %p151 = por %p149, %p150
    %p153 = scmp.ne.s32.totalorder %s138, %s152
    %p154 = scmp.eq.s32.totalorder %s18, 0
    %p155 = por %p153, %p154
    %s156 = ssub.s32 %s12, %s19
    %p157 = scmp.eq.s32.totalorder %s156, 0
    %s159 = sadd.s32 %s158, 1
    %s160 = scalar_select %p157, %s158, %s159
    %p163 = pneg %p157
    %p164 = scmp.eq.s32.totalorder %s12, 3
    %p165 = por %p163, %p164
    %p166 = scmp.ne.s32.totalorder %s158, %s161
    %p167 = scmp.eq.s32.totalorder %s12, 0
    %p168 = por %p166, %p167
    %p169 = scmp.ne.s32.totalorder %s158, %s161
    %p170 = scmp.eq.s32.totalorder %s17, 3
    %p171 = por %p169, %p170
    %p172 = scmp.ne.s32.totalorder %s161, %s162
    %p173 = scmp.eq.s32.totalorder %s17, 0
    %p174 = por %p172, %p173
    %p175 = scmp.ne.s32.totalorder %s161, %s162
    %p176 = scmp.eq.s32.totalorder %s18, 3
    %p177 = por %p175, %p176
    %p179 = scmp.ne.s32.totalorder %s162, %s178
    %p180 = scmp.eq.s32.totalorder %s18, 0
    %p181 = por %p179, %p180
    %p182 = scmp.le.s32.totalorder 1, %s12
    %p183 = scmp.lt.s32.totalorder %s12, 5
    %p184 = pnand %p182, %p183
    %p185 = pneg %p184
    // Predicated region
    $region9: #{tpu_custom_call.1} parent=5 // pred_check
      _
    $region10: #{tpu_custom_call.1} parent=5 // pred_check_branch
      %187 = sbr.rel (%p184) target = $region12
    $region11: #{tpu_custom_call.1} parent=5 // pred_region
      %s188 = ssub.s32 %s12, 1
      // Predicated region
      $region13: #{tpu_custom_call.1} parent=11 // pred_check
        %p189 = pneg %p85
      $region14: #{tpu_custom_call.1} parent=11 // pred_check_branch
        %191 = sbr.rel (%p189) target = $region16
      $region15: #{tpu_custom_call.1} parent=11 // pred_region
        _
      $region16: #{tpu_custom_call.1} parent=11 // pred_fallthru
        _
      // Predicated region
      $region17: #{tpu_custom_call.1} parent=11 // pred_check
        %p192 = pneg %p106
      $region18: #{tpu_custom_call.1} parent=11 // pred_check_branch
        %194 = sbr.rel (%p192) target = $region20
      $region19: #{tpu_custom_call.1} parent=11 // pred_region
        _
      $region20: #{tpu_custom_call.1} parent=11 // pred_fallthru
        _
      // Predicated region
      $region21: #{tpu_custom_call.1} parent=11 // pred_check
        %p195 = pneg %p127
      $region22: #{tpu_custom_call.1} parent=11 // pred_check_branch
        %197 = sbr.rel (%p195) target = $region24
      $region23: #{tpu_custom_call.1} parent=11 // pred_region
        _
      $region24: #{tpu_custom_call.1} parent=11 // pred_fallthru
        _
      // Predicated region
      $region25: #{tpu_custom_call.1} parent=11 // pred_check
        %p198 = pneg %p148
      $region26: #{tpu_custom_call.1} parent=11 // pred_check_branch
        %200 = sbr.rel (%p198) target = $region28
      $region27: #{tpu_custom_call.1} parent=11 // pred_region
        _
      $region28: #{tpu_custom_call.1} parent=11 // pred_fallthru
        _
    $region12: #{tpu_custom_call.1} parent=5 // pred_fallthru
      _
    %p201 = scmp.lt.s32.totalorder %s12, 4
    // Predicated region
    $region29: #{tpu_custom_call.1} parent=5 // pred_check
      %p202 = pneg %p201
    $region30: #{tpu_custom_call.1} parent=5 // pred_check_branch
      %204 = sbr.rel (%p202) target = $region32
    $region31: #{tpu_custom_call.1} parent=5 // pred_region
      // Predicated region
      $region33: #{tpu_custom_call.1} parent=31 // pred_check
        %p205 = pneg %p32
      $region34: #{tpu_custom_call.1} parent=31 // pred_check_branch
        %207 = sbr.rel (%p205) target = $region36
      $region35: #{tpu_custom_call.1} parent=31 // pred_region
        %s208 = smul.u32 2, %s12
        %p209 = scmp.lt.s32.totalorder %s208, 7
        %s210 = scalar_select %p209, %s208, 7
        %s211 = smul.addr %s210, 8
        %s212 = scalar_lea.vmem %s0, %s211
        %s213 = smul.u32 2, %s12
      $region36: #{tpu_custom_call.1} parent=31 // pred_fallthru
        _
      // Predicated region
      $region37: #{tpu_custom_call.1} parent=31 // pred_check
        %p214 = pneg %p58
      $region38: #{tpu_custom_call.1} parent=31 // pred_check_branch
        %216 = sbr.rel (%p214) target = $region40
      $region39: #{tpu_custom_call.1} parent=31 // pred_region
        %s217 = smul.u32 2, %s12
        %p218 = scmp.lt.s32.totalorder %s217, 7
        %s219 = scalar_select %p218, %s217, 7
        %s220 = smul.addr %s219, 8
        %s221 = scalar_lea.vmem %s1, %s220
        %s222 = smul.u32 2, %s12
      $region40: #{tpu_custom_call.1} parent=31 // pred_fallthru
        _
    $region32: #{tpu_custom_call.1} parent=5 // pred_fallthru
      _
    %p223 = scmp.le.s32.totalorder 1, %s12
    %p224 = scmp.lt.s32.totalorder %s12, 5
    %p225 = pnand %p223, %p224
    %p226 = pneg %p225
    // Predicated region
    $region41: #{tpu_custom_call.1} parent=5 // pred_check
      _
    $region42: #{tpu_custom_call.1} parent=5 // pred_check_branch
      %228 = sbr.rel (%p225) target = $region44
    $region43: #{tpu_custom_call.1} parent=5 // pred_region
      %s229 = ssub.s32 %s12, 1
      %s230 = smul.u32 2, %s17
      %p231 = scmp.lt.s32.totalorder %s230, 7
      %s232 = scalar_select %p231, %s230, 7
      %s233 = smul.addr %s232, 8
      %s234 = scalar_lea.vmem %s0, %s233
      %p235 = pneg %p38
      %p236 = pneg %p35
      %s237 = smul.u32 2, %s17
      %p238 = scmp.lt.s32.totalorder %s237, 7
      %s239 = scalar_select %p238, %s237, 7
      %s240 = smul.addr %s239, 8
      %s241 = scalar_lea.vmem %s1, %s240
      %p242 = pneg %p64
      %p243 = pneg %p61
      %p244 = pneg %p85
      %p245 = pneg %p82
      %p246 = pneg %p106
      %p247 = pneg %p103
      %p248 = pneg %p127
      %p249 = pneg %p124
      %p250 = pneg %p148
      %p251 = pneg %p145
      %p252 = pneg %p174
      %p253 = pneg %p171
      %s254 = smul.u32 2, %s17
      %p255 = scmp.lt.s32.totalorder %s254, 7
      %s256 = scalar_select %p255, %s254, 7
      %s257 = smul.addr %s256, 8
      %s258 = scalar_lea.vmem %s6, %s257
      %s259 = smul.u32 2, %s17
      %p260 = scmp.lt.s32.totalorder %s259, 7
      %s261 = scalar_select %p260, %s259, 7
      %s262 = smul.addr %s261, 8
      %s263 = scalar_lea.vmem %s0, %s262
      %s264 = smul.u32 2, %s17
      %s265 = smul.u32 2, %s17
      %p266 = scmp.lt.s32.totalorder %s265, 7
      %s267 = scalar_select %p266, %s265, 7
      %s268 = smul.addr %s267, 8
      %s269 = scalar_lea.vmem %s1, %s268
      %s270 = smul.u32 2, %s17
      %s271 = smul.u32 2, %s17
      %p272 = scmp.lt.s32.totalorder %s271, 7
      %s273 = scalar_select %p272, %s271, 7
      %s274 = smul.addr %s273, 8
      %s275 = scalar_lea.vmem %s6, %s274
      %s276 = smul.u32 2, %s17
      %v277 = vld [vmem:[%s263] sm:$0xff]
      %v278 = vld [vmem:[%s263 + $0x8] sm:$0xff]
      %v279 = vld [vmem:[%s269] sm:$0xff]
      %v280 = vld [vmem:[%s269 + $0x8] sm:$0xff]
      %v281 = vld [vmem:[%s2] sm:$0xf]
      %v282 = vlaneseq
      %v283 = vshrl.u32 %v282, 7
      %v284 = vsub.s32 0, %v283
      %v285 = vrot.slane %v281, %v284
      %v286 = vmul.f32 %v277, %v285
      %v287 = vmul.f32 %v278, %v285
      %vm288 = vcmask 130048
      %v289 = vsel %vm288, %v286, 0.0
      %290 = vadd.xlane.f32.xlu0 %v289
      %v291 = vpop.xlane.xlu0 %290
      %v292 = vsel %vm288, %v287, 0.0
      %293 = vadd.xlane.f32.xlu0 %v292
      %v294 = vpop.xlane.xlu0 %293
      %v295 = vlaneseq
      %v296 = vshrl.u32 %v295, 7
      %v297 = vsub.s32 1, %v296
      %v298 = vrot.slane %v281, %v297
      %v299 = vmul.f32 %v277, %v298
      %v300 = vmul.f32 %v278, %v298
      %v301 = vsel %vm288, %v299, 0.0
      %302 = vadd.xlane.f32.xlu0 %v301
      %v303 = vpop.xlane.xlu0 %302
      %v304 = vsel %vm288, %v300, 0.0
      %305 = vadd.xlane.f32.xlu0 %v304
      %v306 = vpop.xlane.xlu0 %305
      %v307 = vlaneseq
      %v308 = vshrl.u32 %v307, 7
      %v309 = vsub.s32 2, %v308
      %v310 = vrot.slane %v281, %v309
      %v311 = vmul.f32 %v277, %v310
      %v312 = vmul.f32 %v278, %v310
      %v313 = vsel %vm288, %v311, 0.0
      %314 = vadd.xlane.f32.xlu0 %v313
      %v315 = vpop.xlane.xlu0 %314
      %v316 = vsel %vm288, %v312, 0.0
      %317 = vadd.xlane.f32.xlu0 %v316
      %v318 = vpop.xlane.xlu0 %317
      %v319 = vlaneseq
      %v320 = vshrl.u32 %v319, 7
      %v321 = vsub.s32 3, %v320
      %v322 = vrot.slane %v281, %v321
      %v323 = vmul.f32 %v277, %v322
      %v324 = vmul.f32 %v278, %v322
      %v325 = vsel %vm288, %v323, 0.0
      %326 = vadd.xlane.f32.xlu0 %v325
      %v327 = vpop.xlane.xlu0 %326
      %v328 = vsel %vm288, %v324, 0.0
      %329 = vadd.xlane.f32.xlu0 %v328
      %v330 = vpop.xlane.xlu0 %329
      %vm331 = vcmask 7168
      %v332 = vsel %vm331, %v291, %v303
      %v333 = vsel %vm331, %v294, %v306
      %vm334 = vcmask 15360
      %v335 = vsel %vm334, %v332, %v315
      %v336 = vsel %vm334, %v333, %v318
      %vm337 = vcmask 23552
      %v338 = vsel %vm337, %v335, %v327
      %v339 = vsel %vm337, %v336, %v330
      %v340 = vld [vmem:[%s3] sm:$0x1]
      %v342 = vlaneseq
      %v343 = vshrl.u32 %v342, 7
      %v344 = vsub.s32 0, %v343
      %v345 = vrot.slane %v340, %v344
      %v347 = vadd.f32 %v338, %v345
      %v348 = vadd.f32 %v339, %v345
      %v349 = vmax.f32 %v347, 0.0
      %v350 = vmax.f32 %v348, 0.0
      %v351 = vand.u32 2147483647, %v347
      %v352 = vand.u32 2147483647, %v348
      %v353 = vsub.f32 0.0, %v351
      %v354 = vsub.f32 0.0, %v352
      %v355 = vmul.f32 %v353, 1.442695
      %v356 = vpow.pop %v355
      %v357 = vmul.f32 %v354, 1.442695
      %v358 = vpow.pop %v357
      %v359 = vadd.f32 %v356, 1.0
      %v360 = vlog2.pop %v359
      %v361 = vmul.f32 %v360, 0.6931472
      %v362 = vmul.f32 -0.5, %v356
      %v363 = vadd.f32 %v362, 1.0
      %v364 = vmul.f32 %v363, %v356
      %v365 = vand.u32 2147483647, %v356
      %vm366 = vcmp.lt.f32.partialorder %v365, 0.0004427343
      %v367 = vsel %vm366, %v364, %v361
      %v368 = vadd.f32 %v358, 1.0
      %v369 = vlog2.pop %v368
      %v370 = vmul.f32 %v369, 0.6931472
      %v371 = vmul.f32 -0.5, %v358
      %v372 = vadd.f32 %v371, 1.0
      %v373 = vmul.f32 %v372, %v358
      %v374 = vand.u32 2147483647, %v358
      %vm375 = vcmp.lt.f32.partialorder %v374, 0.0004427343
      %v376 = vsel %vm375, %v373, %v370
      %v377 = vadd.f32 %v349, %v367
      %v378 = vadd.f32 %v350, %v376
      %v379 = vrsqrt.pop %v377
      %v380 = vmul.f32 %v377, %v379
      %vm381 = vcmp.eq.f32.partialorder %v377, inf
      %v382 = vsel %vm381, %v377, %v380
      %vm383 = vcmp.eq.f32.partialorder %v377, 0.0
      %v384 = vand.u32 %v377, 2147483648
      %v385 = vsel %vm383, %v384, %v382
      %v386 = vrsqrt.pop %v378
      %v387 = vmul.f32 %v378, %v386
      %vm388 = vcmp.eq.f32.partialorder %v378, inf
      %v389 = vsel %vm388, %v378, %v387
      %vm390 = vcmp.eq.f32.partialorder %v378, 0.0
      %v391 = vand.u32 %v378, 2147483648
      %v392 = vsel %vm390, %v391, %v389
      %v393 = vadd.f32 %v385, 1e-05
      %v394 = vadd.f32 %v392, 1e-05
      %397 = vrot.lane.b32.xlu0 %v279, 2
      %v398 = vpop.permute.xlu0 %397
      %399 = vrot.lane.b32.xlu0 %v280, 2
      %v400 = vpop.permute.xlu0 %399
      %v403 = vmul.f32 %v393, %v398
      %v404 = vmul.f32 %v394, %v400
      %407 = vrot.lane.b32.xlu0 %v403, 126
      %v408 = vpop.permute.xlu0 %407
      %409 = vrot.lane.b32.xlu0 %v404, 126
      %v410 = vpop.permute.xlu0 %409
      %v413 = vadd.f32 %v347, %v408
      %v414 = vadd.f32 %v348, %v410
      %v415 = vld [vmem:[%s4] sm:$0x3]
      %v416 = vld [vmem:[%s5] sm:$0x1]
      %418 = vset.pattern.permute.xlu0 0
      %419 = vperm.xlu0 %418, %v413
      %v420 = vpop.permute.xlu0 %419
      %423 = vset.pattern.permute.xlu0 0
      %424 = vperm.xlu0 %423, %v414
      %v425 = vpop.permute.xlu0 %424
      %v427 = vlaneseq
      %v428 = vshrl.u32 %v427, 7
      %v429 = vsub.s32 0, %v428
      %v430 = vrot.slane %v415, %v429
      %v431 = vmul.f32 %v420, %v430
      %v432 = vmul.f32 %v425, %v430
      %v434 = vlaneseq
      %v435 = vshrl.u32 %v434, 7
      %v436 = vsub.s32 0, %v435
      %v437 = vrot.slane %v416, %v436
      %v439 = vadd.f32 %v437, %v431
      %v440 = vadd.f32 %v437, %v432
      %441 = vset.pattern.permute.xlu0 1
      %442 = vperm.xlu0 %441, %v413
      %v443 = vpop.permute.xlu0 %442
      %445 = vset.pattern.permute.xlu0 1
      %446 = vperm.xlu0 %445, %v414
      %v447 = vpop.permute.xlu0 %446
      %v449 = vlaneseq
      %v450 = vshrl.u32 %v449, 7
      %v451 = vsub.s32 1, %v450
      %v452 = vrot.slane %v415, %v451
      %v453 = vmul.f32 %v443, %v452
      %v454 = vmul.f32 %v447, %v452
      %v455 = vadd.f32 %v439, %v453
      %v456 = vadd.f32 %v440, %v454
      %v457 = vmax.f32 %v455, 0.0
      %v458 = vmax.f32 %v456, 0.0
      %v459 = vand.u32 2147483647, %v455
      %v460 = vand.u32 2147483647, %v456
      %v461 = vsub.f32 0.0, %v459
      %v462 = vsub.f32 0.0, %v460
      %v463 = vmul.f32 %v461, 1.442695
      %v464 = vpow.pop %v463
      %v465 = vmul.f32 %v462, 1.442695
      %v466 = vpow.pop %v465
      %v467 = vadd.f32 %v464, 1.0
      %v468 = vlog2.pop %v467
      %v469 = vmul.f32 %v468, 0.6931472
      %v470 = vmul.f32 -0.5, %v464
      %v471 = vadd.f32 %v470, 1.0
      %v472 = vmul.f32 %v471, %v464
      %v473 = vand.u32 2147483647, %v464
      %vm474 = vcmp.lt.f32.partialorder %v473, 0.0004427343
      %v475 = vsel %vm474, %v472, %v469
      %v476 = vadd.f32 %v466, 1.0
      %v477 = vlog2.pop %v476
      %v478 = vmul.f32 %v477, 0.6931472
      %v479 = vmul.f32 -0.5, %v466
      %v480 = vadd.f32 %v479, 1.0
      %v481 = vmul.f32 %v480, %v466
      %v482 = vand.u32 2147483647, %v466
      %vm483 = vcmp.lt.f32.partialorder %v482, 0.0004427343
      %v484 = vsel %vm483, %v481, %v478
      %v485 = vadd.f32 %v457, %v475
      %v486 = vadd.f32 %v458, %v484
      %v487 = vrsqrt.pop %v485
      %v488 = vmul.f32 %v485, %v487
      %vm489 = vcmp.eq.f32.partialorder %v485, inf
      %v490 = vsel %vm489, %v485, %v488
      %vm491 = vcmp.eq.f32.partialorder %v485, 0.0
      %v492 = vand.u32 %v485, 2147483648
      %v493 = vsel %vm491, %v492, %v490
      %v494 = vrsqrt.pop %v486
      %v495 = vmul.f32 %v486, %v494
      %vm496 = vcmp.eq.f32.partialorder %v486, inf
      %v497 = vsel %vm496, %v486, %v495
      %vm498 = vcmp.eq.f32.partialorder %v486, 0.0
      %v499 = vand.u32 %v486, 2147483648
      %v500 = vsel %vm498, %v499, %v497
      %v501 = vadd.f32 %v493, 1e-05
      %v502 = vadd.f32 %v500, 1e-05
      %v503 = vrcp.pop %v501
      %v504 = vrcp.pop %v502
      %v505 = vsub.f32 %v277, %v455
      %v506 = vsub.f32 %v278, %v456
      %509 = vrot.lane.b32.xlu0 %v503, 112
      %v510 = vpop.permute.xlu0 %509
      %511 = vrot.lane.b32.xlu0 %v504, 112
      %v512 = vpop.permute.xlu0 %511
      %v515 = vmul.f32 %v505, %v510
      %v516 = vmul.f32 %v506, %v512
      %v517 = vmul.f32 %v515, -0.5
      %v518 = vmul.f32 %v516, -0.5
      %v519 = vmul.f32 %v517, %v515
      %v520 = vmul.f32 %v518, %v516
      %v521 = vlog2.pop %v501
      %v522 = vmul.f32 %v521, 0.6931472
      %v523 = vlog2.pop %v502
      %v524 = vmul.f32 %v523, 0.6931472
      %527 = vrot.lane.b32.xlu0 %v522, 112
      %v528 = vpop.permute.xlu0 %527
      %529 = vrot.lane.b32.xlu0 %v524, 112
      %v530 = vpop.permute.xlu0 %529
      %v533 = vsub.f32 %v519, %v528
      %v534 = vsub.f32 %v520, %v530
      %v535 = vsel %vm288, %v533, 0.0
      %536 = vadd.xlane.f32.xlu0 %v535
      %v537 = vpop.xlane.xlu0 %536
      %v538 = vsel %vm288, %v534, 0.0
      %539 = vadd.xlane.f32.xlu0 %v538
      %v540 = vpop.xlane.xlu0 %539
      %v541 = vsub.f32 %v537, 14.703016
      %v542 = vsub.f32 %v540, 14.703016
      %v543 = vmul.f32 %v413, %v413
      %v544 = vmul.f32 %v414, %v414
      %v545 = vmul.f32 %v279, %v279
      %v546 = vmul.f32 %v280, %v280
      %v547 = vsub.f32 %v543, %v545
      %v548 = vsub.f32 %v544, %v546
      %v549 = vmul.f32 %v547, 0.5
      %v550 = vmul.f32 %v548, 0.5
      %v551 = vlog2.pop %v393
      %v552 = vmul.f32 %v551, 0.6931472
      %v553 = vlog2.pop %v394
      %v554 = vmul.f32 %v553, 0.6931472
      %557 = vrot.lane.b32.xlu0 %v552, 126
      %v558 = vpop.permute.xlu0 %557
      %559 = vrot.lane.b32.xlu0 %v554, 126
      %v560 = vpop.permute.xlu0 %559
      %v563 = vsub.f32 %v549, %v558
      %v564 = vsub.f32 %v550, %v560
      %v565 = vsel %vm334, %v563, 0.0
      %566 = vadd.xlane.f32.xlu0 %v565
      %v567 = vpop.xlane.xlu0 %566
      %v568 = vsel %vm334, %v564, 0.0
      %569 = vadd.xlane.f32.xlu0 %v568
      %v570 = vpop.xlane.xlu0 %569
      %v571 = vsub.f32 %v541, %v567
      %v572 = vsub.f32 %v542, %v570
      %573 = vrot.lane.b32.xlu0 %v413, 3
      %v574 = vpop.permute.xlu0 %573
      %575 = vrot.lane.b32.xlu0 %v414, 3
      %v576 = vpop.permute.xlu0 %575
      %581 = vrot.lane.b32.xlu0 %v347, 5
      %v582 = vpop.permute.xlu0 %581
      %583 = vrot.lane.b32.xlu0 %v348, 5
      %v584 = vpop.permute.xlu0 %583
      %589 = vrot.lane.b32.xlu0 %v377, 5
      %v590 = vpop.permute.xlu0 %589
      %591 = vrot.lane.b32.xlu0 %v378, 5
      %v592 = vpop.permute.xlu0 %591
      %597 = vrot.lane.b32.xlu0 %v455, 9
      %v598 = vpop.permute.xlu0 %597
      %599 = vrot.lane.b32.xlu0 %v456, 9
      %v600 = vpop.permute.xlu0 %599
      %605 = vrot.lane.b32.xlu0 %v485, 9
      %v606 = vpop.permute.xlu0 %605
      %607 = vrot.lane.b32.xlu0 %v486, 9
      %v608 = vpop.permute.xlu0 %607
      %v611 = vsel %vm331, %v571, %v541
      %v612 = vsel %vm331, %v572, %v542
      %v613 = vsel %vm334, %v611, %v567
      %v614 = vsel %vm334, %v612, %v570
      %v615 = vsel %vm337, %v613, %v574
      %v616 = vsel %vm337, %v614, %v576
      %vm617 = vcmask 39936
      %v618 = vsel %vm617, %v615, %v582
      %v619 = vsel %vm617, %v616, %v584
      %vm620 = vcmask 56320
      %v621 = vsel %vm620, %v618, %v590
      %v622 = vsel %vm620, %v619, %v592
      %vm623 = vcmask 72704
      %v624 = vsel %vm623, %v621, %v598
      %v625 = vsel %vm623, %v622, %v600
      %vm626 = vcmask 203776
      %v627 = vsel %vm626, %v624, %v606
      %v628 = vsel %vm626, %v625, %v608
      %vm629 = vcmask 334848
      %630 = vst.msk [vmem:[%s275] sm:$0xff] %vm629, %v627
      %631 = vst.msk [vmem:[%s275 + $0x8] sm:$0xff] %vm629, %v628
      %s632 = smul.u32 2, %s17
      %p633 = scmp.lt.s32.totalorder %s632, 7
      %s634 = scalar_select %p633, %s632, 7
      %s635 = smul.addr %s634, 8
      %s636 = scalar_lea.vmem %s6, %s635
      // Predicated region
      $region45: #{tpu_custom_call.1} parent=43 // pred_check
        %p637 = pneg %p171
      $region46: #{tpu_custom_call.1} parent=43 // pred_check_branch
        %639 = sbr.rel (%p637) target = $region48
      $region47: #{tpu_custom_call.1} parent=43 // pred_region
        %s640 = smul.u32 2, %s17
      $region48: #{tpu_custom_call.1} parent=43 // pred_fallthru
        _
    $region44: #{tpu_custom_call.1} parent=5 // pred_fallthru
      _
    %p641 = scmp.le.s32.totalorder 2, %s12
    // Predicated region
    $region49: #{tpu_custom_call.1} parent=5 // pred_check
      %p642 = pneg %p641
    $region50: #{tpu_custom_call.1} parent=5 // pred_check_branch
      %644 = sbr.rel (%p642) target = $region52
    $region51: #{tpu_custom_call.1} parent=5 // pred_region
      %s645 = ssub.s32 %s12, 2
      // Predicated region
      $region53: #{tpu_custom_call.1} parent=51 // pred_check
        %p646 = pneg %p177
      $region54: #{tpu_custom_call.1} parent=51 // pred_check_branch
        %648 = sbr.rel (%p646) target = $region56
      $region55: #{tpu_custom_call.1} parent=51 // pred_region
        %s649 = smul.u32 2, %s18
        %p650 = scmp.lt.s32.totalorder %s649, 7
        %s651 = scalar_select %p650, %s649, 7
        %s652 = smul.addr %s651, 8
        %s653 = scalar_lea.vmem %s6, %s652
      $region56: #{tpu_custom_call.1} parent=51 // pred_fallthru
        _
    $region52: #{tpu_custom_call.1} parent=5 // pred_fallthru
      _
  $region6: #{tpu_custom_call.1} parent=0 // loop_footer
    %s16 = sadd.s32 1, %s12
  $region7: #{tpu_custom_call.1} parent=0 // loop_footer_branch
    %11 = sbr.rel target = $region3
  $region8: #{tpu_custom_call.1} parent=0 // loop_exit
    _

</llo_original>
